<compile_context>
chip_gen: v7x
topology: tpu7x:2x2x1
jax: 0.10.0
libtpu: 0.0.40
codegen_flags: <defaults>
</compile_context>

<pallas_src>
import jax
import jax.numpy as jnp
from jax.experimental import pallas as pl
from jax.experimental.pallas import tpu as pltpu


def _round_up(x, m):
    return (x + m - 1) // m * m


def _pick_tile_cols(dhw, cin, s3cout, dtype_bytes, budget_bytes=16 << 20):
    """Largest multiple-of-128 column tile whose double-buffered in+out tiles fit the budget."""
    per_col = 2 * dtype_bytes * (cin + s3cout)          # double-buffered input + output column
    max_cols = max(128, (budget_bytes // per_col) // 128 * 128)
    return int(min(2048, max_cols, _round_up(dhw, 128)))


def _deconv_matmul_kernel(x_ref, w_ref, b_ref, o_ref):
    """One spatial tile of the stride-s transposed conv.

    x_ref: (1, Cin, TC)       activations: channels on sublanes, spatial columns on lanes
    w_ref: (S3*Cout, Cin)     weight matrix, rows ordered (p, q, r, cout)
    b_ref: (S3*Cout, 1)       bias, broadcast across the lane (spatial) dim
    o_ref: (1, S3*Cout, TC)   output tile (lane-dense: TC is a multiple of 128)
    """
    y = jnp.dot(w_ref[...], x_ref[0], preferred_element_type=jnp.float32)
    y = y + b_ref[...].astype(jnp.float32)
    o_ref[0] = jnp.maximum(y, 0.0).astype(o_ref.dtype)


def upsampling_deconv_block(x, weight, bias, *, stride=2, normalization='none'):
    """Pallas forward of UpsamplingDeconvBlock.

    x:      (N, Cin, D, H, W)                 NCDHW (PyTorch layout)
    weight: (Cin, Cout, s, s, s)              PyTorch ConvTranspose3d weight layout
    bias:   (Cout,)
    returns (N, Cout, s*D, s*H, s*W)
    """
    if normalization != 'none':
        # TODO(synk): batchnorm/groupnorm/instancenorm branches not implemented.
        raise NotImplementedError("only normalization='none' is implemented")

    s = stride
    N, Ci, D, H, W = x.shape
    assert weight.shape[0] == Ci and weight.shape[2:] == (s, s, s), weight.shape
    Co = weight.shape[1]
    s3co = (s ** 3) * Co
    dhw = D * H * W
    dtype_bytes = jnp.dtype(x.dtype).itemsize

    # Weight matrix: rows ordered (p, q, r, cout); columns = Cin.  Bias matches row order.
    w_mat = jnp.transpose(weight, (2, 3, 4, 1, 0)).reshape(s3co, Ci)
    b_mat = jnp.tile(bias, s ** 3).reshape(s3co, 1)

    # Activations as (N, Cin, D*H*W): free reshape of NCDHW -- no transpose, no halo pad.
    x3 = x.reshape(N, Ci, dhw)

    tile_cols = _pick_tile_cols(dhw, Ci, s3co, dtype_bytes)
    dhw_pad = _round_up(dhw, tile_cols)
    if dhw_pad != dhw:
        x3 = jnp.pad(x3, ((0, 0), (0, 0), (0, dhw_pad - dhw)))

    grid = (N, dhw_pad // tile_cols)

    flops = 2 * N * dhw * Ci * s3co
    bytes_accessed = dtype_bytes * (x3.size + w_mat.size + b_mat.size + N * s3co * dhw_pad)
    vmem_bytes = int(2 * (Ci + s3co) * tile_cols * dtype_bytes     # double-buffered x/out tiles
                     + (s3co * Ci + s3co) * dtype_bytes            # resident weight + bias
                     + (4 << 20))                                  # headroom
    vmem_bytes = min(max(vmem_bytes, 8 << 20), 64 << 20)           # stays within v7x's 64 MiB

    out = pl.pallas_call(
        _deconv_matmul_kernel,
        out_shape=jax.ShapeDtypeStruct((N, s3co, dhw_pad), x.dtype),
        grid=grid,
        in_specs=[
            pl.BlockSpec((1, Ci, tile_cols), lambda n, j: (n, 0, j)),
            pl.BlockSpec((s3co, Ci), lambda n, j: (0, 0)),
            pl.BlockSpec((s3co, 1), lambda n, j: (0, 0)),
        ],
        out_specs=pl.BlockSpec((1, s3co, tile_cols), lambda n, j: (n, 0, j)),
        compiler_params=pltpu.CompilerParams(
            dimension_semantics=("parallel", "parallel"),
            vmem_limit_bytes=int(vmem_bytes)),
        cost_estimate=pl.CostEstimate(flops=int(flops), transcendentals=0,
                                      bytes_accessed=int(bytes_accessed)),
    )(x3, w_mat, b_mat)

    # Tap -> spatial interleave (single XLA layout permutation), already in NCDHW order.
    y = out[:, :, :dhw].reshape(N, s, s, s, Co, D, H, W)
    y = jnp.transpose(y, (0, 4, 5, 1, 6, 2, 7, 3))          # (N, Co, D, p, H, q, W, r)
    return y.reshape(N, Co, D * s, H * s, W * s)


def upsampling_deconv_block_ref(x, weight, bias, *, stride=2):
    """Pure-JAX reference matching PyTorch ConvTranspose3d(k=s, stride=s, pad=0) + ReLU."""
    N, Ci, D, H, W = x.shape
    Co = weight.shape[1]
    s = stride
    y = jnp.einsum('ncdhw,copqr->nodphqwr', x, weight)
    y = y.reshape(N, Co, D * s, H * s, W * s) + bias[None, :, None, None, None]
    return jax.nn.relu(y)


if __name__ == "__main__":
    N, Cin, Cout = 2, 32, 16
    D = H = W = 8
    stride = 2

    key = jax.random.PRNGKey(0)
    kx, kw, kb = jax.random.split(key, 3)
    x = jax.random.normal(kx, (N, Cin, D, H, W), jnp.float32)
    weight = jax.random.normal(kw, (Cin, Cout, stride, stride, stride), jnp.float32) * 0.05
    bias = jax.random.normal(kb, (Cout,), jnp.float32) * 0.05

    out = jax.block_until_ready(upsampling_deconv_block(x, weight, bias, stride=stride))
    ref = jax.block_until_ready(upsampling_deconv_block_ref(x, weight, bias, stride=stride))

    assert out.shape == (N, Cout, D * stride, H * stride, W * stride), out.shape
    max_err = float(jnp.max(jnp.abs(out - ref)))
    if not jnp.allclose(out, ref, atol=1e-3, rtol=1e-3):
        raise AssertionError(f"Pallas kernel mismatch vs reference, max_err={max_err}")
    print("KERNEL_OK")
</pallas_src>

<mosaic_0001>
module attributes {stable_mosaic.version = 11 : i64} {
  func.func @_deconv_matmul_kernel(%arg0: i32, %arg1: i32, %arg2: memref<1x32x512xf32, #tpu.memory_space<vmem>>, %arg3: memref<128x32xf32, #tpu.memory_space<vmem>>, %arg4: memref<128x1xf32, #tpu.memory_space<vmem>>, %arg5: memref<1x128x512xf32, #tpu.memory_space<vmem>>) attributes {dimension_semantics = [#tpu.dimension_semantics<parallel>, #tpu.dimension_semantics<parallel>], iteration_bounds = array<i64: 2, 1>, scalar_prefetch = 0 : i64, scratch_operands = 0 : i64, tpu.core_type = #tpu.core_type<tc>, window_params = [{transform_indices = @transform_0, window_bounds = array<i64: 1, 32, 512>}, {pipeline_mode = #tpu.pipeline_mode<synchronous>, transform_indices = @transform_1, window_bounds = array<i64: 128, 32>}, {pipeline_mode = #tpu.pipeline_mode<synchronous>, transform_indices = @transform_2, window_bounds = array<i64: 128, 1>}, {transform_indices = @transform_3, window_bounds = array<i64: 1, 128, 512>}]} {
    %c0 = arith.constant 0 : index
    %c0_0 = arith.constant 0 : index
    %0 = vector.load %arg3[%c0, %c0_0] : memref<128x32xf32, #tpu.memory_space<vmem>>, vector<128x32xf32>
    %c0_1 = arith.constant 0 : index
    %c0_2 = arith.constant 0 : index
    %c0_3 = arith.constant 0 : index
    %1 = vector.load %arg2[%c0_1, %c0_2, %c0_3] : memref<1x32x512xf32, #tpu.memory_space<vmem>>, vector<1x32x512xf32>
    %2 = vector.shape_cast %1 : vector<1x32x512xf32> to vector<32x512xf32>
    %cst = arith.constant dense<0.000000e+00> : vector<128x512xf32>
    %3 = tpu.matmul %0, %2, %cst {dimension_numbers = #tpu.dot_dimension_numbers<[1], [0], [0], [1], [0, 0, 1, 1], [], []>} : vector<128x32xf32>, vector<32x512xf32>, vector<128x512xf32> -> vector<128x512xf32>
    %c0_4 = arith.constant 0 : index
    %c0_5 = arith.constant 0 : index
    %4 = vector.load %arg4[%c0_4, %c0_5] : memref<128x1xf32, #tpu.memory_space<vmem>>, vector<128x1xf32>
    %5 = vector.broadcast %4 : vector<128x1xf32> to vector<128x512xf32>
    %6 = arith.addf %3, %5 : vector<128x512xf32>
    %cst_6 = arith.constant 0.000000e+00 : f32
    %7 = vector.broadcast %cst_6 : f32 to vector<128x512xf32>
    %8 = arith.maximumf %6, %7 : vector<128x512xf32>
    %c0_7 = arith.constant 0 : index
    %c0_8 = arith.constant 0 : index
    %c0_9 = arith.constant 0 : index
    %9 = vector.load %arg5[%c0_7, %c0_8, %c0_9] : memref<1x128x512xf32, #tpu.memory_space<vmem>>, vector<1x128x512xf32>
    %10 = vector.shape_cast %9 : vector<1x128x512xf32> to vector<128x512xf32>
    %11 = vector.shape_cast %8 : vector<128x512xf32> to vector<1x128x512xf32>
    tpu.vector_store %arg5[%c0_7, %c0_8, %c0_9], %11 {strides = array<i32>} : memref<1x128x512xf32, #tpu.memory_space<vmem>>, vector<1x128x512xf32>,
    return
  }
  func.func @transform_0(%arg0: i32, %arg1: i32) -> (i32, i32, i32) {
    %c0_i32 = arith.constant 0 : i32
    %c0_i32_0 = arith.constant 0 : i32
    return %arg0, %c0_i32, %arg1 : i32, i32, i32
  }
  func.func @transform_1(%arg0: i32, %arg1: i32) -> (i32, i32) {
    %c0_i32 = arith.constant 0 : i32
    %c0_i32_0 = arith.constant 0 : i32
    %c0_i32_1 = arith.constant 0 : i32
    return %c0_i32, %c0_i32_0 : i32, i32
  }
  func.func @transform_2(%arg0: i32, %arg1: i32) -> (i32, i32) {
    %c0_i32 = arith.constant 0 : i32
    %c0_i32_0 = arith.constant 0 : i32
    %c0_i32_1 = arith.constant 0 : i32
    return %c0_i32, %c0_i32_0 : i32, i32
  }
  func.func @transform_3(%arg0: i32, %arg1: i32) -> (i32, i32, i32) {
    %c0_i32 = arith.constant 0 : i32
    %c0_i32_0 = arith.constant 0 : i32
    return %arg0, %c0_i32, %arg1 : i32, i32, i32
  }
}

</mosaic_0001>

<llo_original>
// kernel: tpu_custom_call.1
$region0: #{tpu_custom_call.1}
  #allocation0 [shape = 'u32[]', space=smem, size = 0x4, offset = 0x4, fixed_abs, tag = 'smem constant byte address 0x4 - core index']
  #allocation1 [shape = 'u32[144,128]{1,0:T(1,128)}', space=vmem, size = 0x12000, scoped, tag = 'internal scratch']
  %s0 = inlined_call_operand.vmem [shape: f32[2,32,512], index: 0, kind: input, shape index: {}]
  %s1 = inlined_call_operand.vmem [shape: f32[128,32], index: 1, kind: input, shape index: {}]
  %s2 = inlined_call_operand.vmem [shape: f32[128,1], index: 2, kind: input, shape index: {}]
  %s3 = inlined_call_operand.hbm [shape: f32[2,128,512], index: 3, kind: output, shape index: {}]
  %s4 = sld [smem:[#allocation0]]
  $region45: #{tpu_custom_call.1} parent=0
    _
  %s6 = ssub.s32 1, %s4
  %s7 = scalar_select 0, %s6, %s4
  $region1: #{tpu_custom_call.1} parent=0
    #allocation2 [shape = 'u8[524288]{0}', space=vmem, size = 0x80000, scoped, tag = 'output window, operand 0']
    #allocation3 [shape = 's32[2]{0}', space=sflag, size = 0x8, scoped, tag = 'scoped memory for tpu_custom_call.1']
    %8 = vsyncpa [#allocation3], 0
    %s9 = scalar_lea.sflag [#allocation3], 1
    %10 = vsyncpa %s9, 0
    loop: start=0, step=1, limit=4
    $region2: #{tpu_custom_call.1} parent=1 // loop_pre_header
      _
    $region3: #{tpu_custom_call.1} parent=1 // loop_header
      %s12 = sphi 0, %s16
      %p13 = scmp.ge.s32.totalorder %s12, 4
      %s19 = sphi 0, %s31
      %s20 = sphi 0, %s27
      %s21 = sphi 0, %s19
      %s22 = sphi 0, %s20
      %s23 = sphi 0, %s21
      %s24 = sphi 0, %s22
      %s36 = sphi 0, %s38
      %s39 = sphi 0, %s36
      %s40 = sphi 0, %s39
      %s56 = sphi 0, %s40
      %s60 = sphi 0, %s60
      %s62 = sphi 0, %s60
      %s63 = sphi 0, %s62
      %s77 = sphi 0, %s63
      %s81 = sphi 0, %s81
      %s83 = sphi 0, %s81
      %s84 = sphi 0, %s83
      %s98 = sphi 0, %s84
      %s106 = sphi 0, %s108
      %s109 = sphi 0, %s106
      %s110 = sphi 0, %s109
      %s126 = sphi 0, %s110
    $region4: #{tpu_custom_call.1} parent=1 // loop_header_branch
      %15 = sbr.rel (%p13) target = $region8
    $region5: #{tpu_custom_call.1} parent=1 // loop_body
      %s17 = ssub.s32 %s12, 1
      %s18 = ssub.s32 %s12, 2
      %s25 = sadd.s32 1, %s20
      %p26 = scmp.ge.s32.totalorder %s25, 1
      %s27 = scalar_select %p26, 0, %s25
      %s28 = sadd.s32 1, %s19
      %s29 = scalar_select %p26, %s28, %s19
      %p30 = scmp.ge.s32.totalorder %s29, 2
      %s31 = scalar_select %p30, 0, %s29
      %s32 = ssub.s32 %s19, %s31
      %s33 = ssub.s32 %s20, %s27
      %s34 = sor.u32 %s32, %s33
      %p35 = scmp.eq.s32.totalorder %s34, 0
      %s37 = sadd.s32 %s36, 1
      %s38 = scalar_select %p35, %s36, %s37
      %p41 = pneg %p35
      %p42 = scmp.eq.s32.totalorder %s12, 1
      %p43 = por %p41, %p42
      %p44 = scmp.ne.s32.totalorder %s36, %s39
      %p45 = scmp.eq.s32.totalorder %s12, 0
      %p46 = por %p44, %p45
      %p47 = scmp.ne.s32.totalorder %s36, %s39
      %p48 = scmp.eq.s32.totalorder %s17, 1
      %p49 = por %p47, %p48
      %p50 = scmp.ne.s32.totalorder %s39, %s40
      %p51 = scmp.eq.s32.totalorder %s17, 0
      %p52 = por %p50, %p51
      %p53 = scmp.ne.s32.totalorder %s39, %s40
      %p54 = scmp.eq.s32.totalorder %s18, 1
      %p55 = por %p53, %p54
      %p57 = scmp.ne.s32.totalorder %s40, %s56
      %p58 = scmp.eq.s32.totalorder %s18, 0
      %p59 = por %p57, %p58
      %s61 = sadd.s32 %s60, 1
      %p64 = scmp.eq.s32.totalorder %s12, 1
      %p65 = scmp.ne.s32.totalorder %s60, %s62
      %p66 = scmp.eq.s32.totalorder %s12, 0
      %p67 = por %p65, %p66
      %p68 = scmp.ne.s32.totalorder %s60, %s62
      %p69 = scmp.eq.s32.totalorder %s17, 1
      %p70 = por %p68, %p69
      %p71 = scmp.ne.s32.totalorder %s62, %s63
      %p72 = scmp.eq.s32.totalorder %s17, 0
      %p73 = por %p71, %p72
      %p74 = scmp.ne.s32.totalorder %s62, %s63
      %p75 = scmp.eq.s32.totalorder %s18, 1
      %p76 = por %p74, %p75
      %p78 = scmp.ne.s32.totalorder %s63, %s77
      %p79 = scmp.eq.s32.totalorder %s18, 0
      %p80 = por %p78, %p79
      %s82 = sadd.s32 %s81, 1
      %p85 = scmp.eq.s32.totalorder %s12, 1
      %p86 = scmp.ne.s32.totalorder %s81, %s83
      %p87 = scmp.eq.s32.totalorder %s12, 0
      %p88 = por %p86, %p87
      %p89 = scmp.ne.s32.totalorder %s81, %s83
      %p90 = scmp.eq.s32.totalorder %s17, 1
      %p91 = por %p89, %p90
      %p92 = scmp.ne.s32.totalorder %s83, %s84
      %p93 = scmp.eq.s32.totalorder %s17, 0
      %p94 = por %p92, %p93
      %p95 = scmp.ne.s32.totalorder %s83, %s84
      %p96 = scmp.eq.s32.totalorder %s18, 1
      %p97 = por %p95, %p96
      %p99 = scmp.ne.s32.totalorder %s84, %s98
      %p100 = scmp.eq.s32.totalorder %s18, 0
      %p101 = por %p99, %p100
      %s102 = ssub.s32 %s19, %s31
      %s103 = ssub.s32 %s20, %s27
      %s104 = sor.u32 %s102, %s103
      %p105 = scmp.eq.s32.totalorder %s104, 0
      %s107 = sadd.s32 %s106, 1
      %s108 = scalar_select %p105, %s106, %s107
      %p111 = pneg %p105
      %p112 = scmp.eq.s32.totalorder %s12, 1
      %p113 = por %p111, %p112
      %p114 = scmp.ne.s32.totalorder %s106, %s109
      %p115 = scmp.eq.s32.totalorder %s12, 0
      %p116 = por %p114, %p115
      %p117 = scmp.ne.s32.totalorder %s106, %s109
      %p118 = scmp.eq.s32.totalorder %s17, 1
      %p119 = por %p117, %p118
      %p120 = scmp.ne.s32.totalorder %s109, %s110
      %p121 = scmp.eq.s32.totalorder %s17, 0
      %p122 = por %p120, %p121
      %p123 = scmp.ne.s32.totalorder %s109, %s110
      %p124 = scmp.eq.s32.totalorder %s18, 1
      %p125 = por %p123, %p124
      %p127 = scmp.ne.s32.totalorder %s110, %s126
      %p128 = scmp.eq.s32.totalorder %s18, 0
      %p129 = por %p127, %p128
      %p130 = scmp.le.s32.totalorder 1, %s12
      %p131 = scmp.lt.s32.totalorder %s12, 3
      %p132 = pnand %p130, %p131
      %p133 = pneg %p132
      // Predicated region
      $region9: #{tpu_custom_call.1} parent=5 // pred_check
        _
      $region10: #{tpu_custom_call.1} parent=5 // pred_check_branch
        %135 = sbr.rel (%p132) target = $region12
      $region11: #{tpu_custom_call.1} parent=5 // pred_region
        %s136 = ssub.s32 %s12, 1
        // Predicated region
        $region13: #{tpu_custom_call.1} parent=11 // pred_check
          %p137 = pneg %p73
        $region14: #{tpu_custom_call.1} parent=11 // pred_check_branch
          %139 = sbr.rel (%p137) target = $region16
        $region15: #{tpu_custom_call.1} parent=11 // pred_region
          _
        $region16: #{tpu_custom_call.1} parent=11 // pred_fallthru
          _
        // Predicated region
        $region17: #{tpu_custom_call.1} parent=11 // pred_check
          %p140 = pneg %p94
        $region18: #{tpu_custom_call.1} parent=11 // pred_check_branch
          %142 = sbr.rel (%p140) target = $region20
        $region19: #{tpu_custom_call.1} parent=11 // pred_region
          _
        $region20: #{tpu_custom_call.1} parent=11 // pred_fallthru
          _
      $region12: #{tpu_custom_call.1} parent=5 // pred_fallthru
        _
      %p143 = scmp.lt.s32.totalorder %s12, 2
      // Predicated region
      $region21: #{tpu_custom_call.1} parent=5 // pred_check
        %p144 = pneg %p143
      $region22: #{tpu_custom_call.1} parent=5 // pred_check_branch
        %146 = sbr.rel (%p144) target = $region24
      $region23: #{tpu_custom_call.1} parent=5 // pred_region
        // Predicated region
        $region25: #{tpu_custom_call.1} parent=23 // pred_check
          %p147 = pneg %p46
        $region26: #{tpu_custom_call.1} parent=23 // pred_check_branch
          %149 = sbr.rel (%p147) target = $region28
        $region27: #{tpu_custom_call.1} parent=23 // pred_region
          %s150 = smul.u32 4, %s20
          %p151 = scmp.lt.s32.totalorder %s19, 1
          %s152 = scalar_select %p151, %s19, 1
          %p153 = scmp.lt.s32.totalorder %s150, 3
          %s154 = scalar_select %p153, %s150, 3
          %s155 = smul.addr %s152, 16
          %s156 = sadd.s32 %s154, %s155
          %s157 = smul.addr %s156, 8
          %s158 = scalar_lea.vmem %s0, %s157
          %s159 = smul.u32 4, %s20
        $region28: #{tpu_custom_call.1} parent=23 // pred_fallthru
          _
      $region24: #{tpu_custom_call.1} parent=5 // pred_fallthru
        _
      %p160 = scmp.le.s32.totalorder 1, %s12
      %p161 = scmp.lt.s32.totalorder %s12, 3
      %p162 = pnand %p160, %p161
      %p163 = pneg %p162
      // Predicated region
      $region29: #{tpu_custom_call.1} parent=5 // pred_check
        _
      $region30: #{tpu_custom_call.1} parent=5 // pred_check_branch
        %165 = sbr.rel (%p162) target = $region32
      $region31: #{tpu_custom_call.1} parent=5 // pred_region
        %s166 = ssub.s32 %s12, 1
        %s167 = smul.u32 4, %s22
        %p168 = scmp.lt.s32.totalorder %s21, 1
        %s169 = scalar_select %p168, %s21, 1
        %p170 = scmp.lt.s32.totalorder %s167, 3
        %s171 = scalar_select %p170, %s167, 3
        %s172 = smul.addr %s169, 16
        %s173 = sadd.s32 %s171, %s172
        %s174 = smul.addr %s173, 8
        %s175 = scalar_lea.vmem %s0, %s174
        %p176 = pneg %p52
        %p177 = pneg %p49
        %p178 = pneg %p73
        %p179 = pneg %p70
        %p180 = pneg %p94
        %p181 = pneg %p91
        %p182 = pneg %p122
        %p183 = pneg %p119
        %s184 = sand.u32 %s109, 1
        %s185 = scalar_lea.sflag [#allocation3], %s184
        %s186 = sand.u32 %s109, 1
        %s187 = smul.addr %s186, 512
        %s188 = scalar_lea.vmem [#allocation2], %s187
        %s189 = smul.u32 4, %s22
        %p190 = scmp.lt.s32.totalorder %s21, 1
        %s191 = scalar_select %p190, %s21, 1
        %p192 = scmp.lt.s32.totalorder %s189, 3
        %s193 = scalar_select %p192, %s189, 3
        %s194 = smul.addr %s191, 16
        %s195 = sadd.s32 %s193, %s194
        %s196 = smul.addr %s195, 8
        %s197 = scalar_lea.vmem %s0, %s196
        %s198 = smul.u32 4, %s22
        %s199 = smul.u32 4, %s22
        %v200 = vld [vmem:[%s1] sm:$0xff]
        %v201 = vld [vmem:[%s1 + $0x8] sm:$0xff]
        %v202 = vld [vmem:[%s1 + $0x10] sm:$0xff]
        %v203 = vld [vmem:[%s1 + $0x18] sm:$0xff]
        %v204 = vld [vmem:[%s1 + $0x20] sm:$0xff]
        %v205 = vld [vmem:[%s1 + $0x28] sm:$0xff]
        %v206 = vld [vmem:[%s1 + $0x30] sm:$0xff]
        %v207 = vld [vmem:[%s1 + $0x38] sm:$0xff]
        %v208 = vld [vmem:[%s1 + $0x40] sm:$0xff]
        %v209 = vld [vmem:[%s1 + $0x48] sm:$0xff]
        %v210 = vld [vmem:[%s1 + $0x50] sm:$0xff]
        %v211 = vld [vmem:[%s1 + $0x58] sm:$0xff]
        %v212 = vld [vmem:[%s1 + $0x60] sm:$0xff]
        %v213 = vld [vmem:[%s1 + $0x68] sm:$0xff]
        %v214 = vld [vmem:[%s1 + $0x70] sm:$0xff]
        %v215 = vld [vmem:[%s1 + $0x78] sm:$0xff]
        %v216 = vld [vmem:[%s197] sm:$0xff]
        %v217 = vld [vmem:[%s197 + $0x8] sm:$0xff]
        %v218 = vld [vmem:[%s197 + $0x10] sm:$0xff]
        %v219 = vld [vmem:[%s197 + $0x18] sm:$0xff]
        %v220 = vld [vmem:[%s197 + $0x20] sm:$0xff]
        %v221 = vld [vmem:[%s197 + $0x28] sm:$0xff]
        %v222 = vld [vmem:[%s197 + $0x30] sm:$0xff]
        %v223 = vld [vmem:[%s197 + $0x38] sm:$0xff]
        %v224 = vld [vmem:[%s197 + $0x40] sm:$0xff]
        %v225 = vld [vmem:[%s197 + $0x48] sm:$0xff]
        %v226 = vld [vmem:[%s197 + $0x50] sm:$0xff]
        %v227 = vld [vmem:[%s197 + $0x58] sm:$0xff]
        %v228 = vld [vmem:[%s197 + $0x60] sm:$0xff]
        %v229 = vld [vmem:[%s197 + $0x68] sm:$0xff]
        %v230 = vld [vmem:[%s197 + $0x70] sm:$0xff]
        %v231 = vld [vmem:[%s197 + $0x78] sm:$0xff]
        %v232 = vld [vmem:[%s2] sm:$0xff]
        %v233 = vld [vmem:[%s2 + $0x8] sm:$0xff]
        %v234 = vld [vmem:[%s2 + $0x10] sm:$0xff]
        %v235 = vld [vmem:[%s2 + $0x18] sm:$0xff]
        %v236 = vld [vmem:[%s2 + $0x20] sm:$0xff]
        %v237 = vld [vmem:[%s2 + $0x28] sm:$0xff]
        %v238 = vld [vmem:[%s2 + $0x30] sm:$0xff]
        %v239 = vld [vmem:[%s2 + $0x38] sm:$0xff]
        %v240 = vld [vmem:[%s2 + $0x40] sm:$0xff]
        %v241 = vld [vmem:[%s2 + $0x48] sm:$0xff]
        %v242 = vld [vmem:[%s2 + $0x50] sm:$0xff]
        %v243 = vld [vmem:[%s2 + $0x58] sm:$0xff]
        %v244 = vld [vmem:[%s2 + $0x60] sm:$0xff]
        %v245 = vld [vmem:[%s2 + $0x68] sm:$0xff]
        %v246 = vld [vmem:[%s2 + $0x70] sm:$0xff]
        %v247 = vld [vmem:[%s2 + $0x78] sm:$0xff]
        %249 = vset.pattern.permute.xlu0 0
        %250 = vperm.xlu0 %249, %v232
        %v251 = vpop.permute.xlu0 %250
        %254 = vset.pattern.permute.xlu0 0
        %255 = vperm.xlu0 %254, %v233
        %v256 = vpop.permute.xlu0 %255
        %259 = vset.pattern.permute.xlu0 0
        %260 = vperm.xlu0 %259, %v234
        %v261 = vpop.permute.xlu0 %260
        %264 = vset.pattern.permute.xlu0 0
        %265 = vperm.xlu0 %264, %v235
        %v266 = vpop.permute.xlu0 %265
        %269 = vset.pattern.permute.xlu0 0
        %270 = vperm.xlu0 %269, %v236
        %v271 = vpop.permute.xlu0 %270
        %274 = vset.pattern.permute.xlu0 0
        %275 = vperm.xlu0 %274, %v237
        %v276 = vpop.permute.xlu0 %275
        %279 = vset.pattern.permute.xlu0 0
        %280 = vperm.xlu0 %279, %v238
        %v281 = vpop.permute.xlu0 %280
        %284 = vset.pattern.permute.xlu0 0
        %285 = vperm.xlu0 %284, %v239
        %v286 = vpop.permute.xlu0 %285
        %289 = vset.pattern.permute.xlu0 0
        %290 = vperm.xlu0 %289, %v240
        %v291 = vpop.permute.xlu0 %290
        %294 = vset.pattern.permute.xlu0 0
        %295 = vperm.xlu0 %294, %v241
        %v296 = vpop.permute.xlu0 %295
        %299 = vset.pattern.permute.xlu0 0
        %300 = vperm.xlu0 %299, %v242
        %v301 = vpop.permute.xlu0 %300
        %304 = vset.pattern.permute.xlu0 0
        %305 = vperm.xlu0 %304, %v243
        %v306 = vpop.permute.xlu0 %305
        %309 = vset.pattern.permute.xlu0 0
        %310 = vperm.xlu0 %309, %v244
        %v311 = vpop.permute.xlu0 %310
        %314 = vset.pattern.permute.xlu0 0
        %315 = vperm.xlu0 %314, %v245
        %v316 = vpop.permute.xlu0 %315
        %319 = vset.pattern.permute.xlu0 0
        %320 = vperm.xlu0 %319, %v246
        %v321 = vpop.permute.xlu0 %320
        %324 = vset.pattern.permute.xlu0 0
        %325 = vperm.xlu0 %324, %v247
        %v326 = vpop.permute.xlu0 %325
        %vm328 = vcmask 261120
        %v330 = vsel %vm328, %v200, 0
        %v333 = vsel %vm328, %v201, 0
        %v336 = vsel %vm328, %v202, 0
        %v339 = vsel %vm328, %v203, 0
        %v342 = vsel %vm328, %v204, 0
        %v345 = vsel %vm328, %v205, 0
        %v348 = vsel %vm328, %v206, 0
        %v351 = vsel %vm328, %v207, 0
        %v354 = vsel %vm328, %v208, 0
        %v357 = vsel %vm328, %v209, 0
        %v360 = vsel %vm328, %v210, 0
        %v363 = vsel %vm328, %v211, 0
        %v366 = vsel %vm328, %v212, 0
        %v369 = vsel %vm328, %v213, 0
        %v372 = vsel %vm328, %v214, 0
        %v375 = vsel %vm328, %v215, 0
        %377 = vmatprep.subr.mxu0 %v217
        %378 = vmatpush1.msra.mxu0 %v216
        %379 = vmatprep.subr.mxu0 %v221
        %380 = vmatpush1.msra.mxu0 %v220
        %381 = vmatprep.subr.mxu0 %v225
        %382 = vmatpush1.msra.mxu0 %v224
        %383 = vmatprep.subr.mxu0 %v229
        %384 = vmatpush1.msra.mxu0 %v228
        %385 = vmatprep.subr.mxu0 0.0
        %386 = vmatpush1.msra.mxu0 0.0
        %387 = vmatprep.subr.mxu0 0.0
        %388 = vmatpush1.msra.mxu0 0.0
        %389 = vmatprep.subr.mxu0 0.0
        %390 = vmatpush1.msra.mxu0 0.0
        %391 = vmatprep.subr.mxu0 0.0
        %392 = vmatpush1.msra.mxu0 0.0
        %393 = vmatprep.subr.mxu0 0.0
        %394 = vmatpush1.msra.mxu0 0.0
        %395 = vmatprep.subr.mxu0 0.0
        %396 = vmatpush1.msra.mxu0 0.0
        %397 = vmatprep.subr.mxu0 0.0
        %398 = vmatpush1.msra.mxu0 0.0
        %399 = vmatprep.subr.mxu0 0.0
        %400 = vmatpush1.msra.mxu0 0.0
        %401 = vmatprep.subr.mxu0 0.0
        %402 = vmatpush1.msra.mxu0 0.0
        %403 = vmatprep.subr.mxu0 0.0
        %404 = vmatpush1.msra.mxu0 0.0
        %405 = vmatprep.subr.mxu0 0.0
        %406 = vmatpush1.msra.mxu0 0.0
        %407 = vmatprep.subr.mxu0 0.0
        %408 = vmatpush1.msra.mxu0 0.0
        %409 = vmatprep.subr.mxu0 0.0
        %410 = vmatpush1.msra.mxu0 0.0
        %411 = vmatprep.subr.mxu0 0.0
        %412 = vmatpush1.msra.mxu0 0.0
        %413 = vmatprep.subr.mxu0 0.0
        %414 = vmatpush1.msra.mxu0 0.0
        %415 = vmatprep.subr.mxu0 0.0
        %416 = vmatpush1.msra.mxu0 0.0
        %417 = vmatprep.subr.mxu0 0.0
        %418 = vmatpush1.msra.mxu0 0.0
        %419 = vmatprep.subr.mxu0 0.0
        %420 = vmatpush1.msra.mxu0 0.0
        %421 = vmatprep.subr.mxu0 0.0
        %422 = vmatpush1.msra.mxu0 0.0
        %423 = vmatprep.subr.mxu0 0.0
        %424 = vmatpush1.msra.mxu0 0.0
        %425 = vmatprep.subr.mxu0 0.0
        %426 = vmatpush1.msra.mxu0 0.0
        %427 = vmatprep.subr.mxu0 0.0
        %428 = vmatpush1.msra.mxu0 0.0
        %429 = vmatprep.subr.mxu0 0.0
        %430 = vmatpush1.msra.mxu0 0.0
        %431 = vmatprep.subr.mxu0 0.0
        %432 = vmatpush1.msra.mxu0 0.0
        %433 = vmatprep.subr.mxu0 0.0
        %434 = vmatpush1.msra.mxu0 0.0
        %435 = vmatprep.subr.mxu0 0.0
        %436 = vmatpush1.msra.mxu0 0.0
        %437 = vmatprep.subr.mxu0 0.0
        %438 = vmatpush1.msra.mxu0 0.0
        %439 = vmatprep.subr.mxu0 0.0
        %440 = vmatpush1.msra.mxu0 0.0
        %441 = vmatprep.mubr.f32.mxu0 0.0
        %442 = vmatmul.mubr.f32.gmra.mrb[0].mxu0 %v330
        %v443 = vpop.f32.mrb[0].mxu0
        %v444 = vadd.f32 %v251, %v443
        %v445 = vpop.f32.mrb[0].mxu0
        %v446 = vadd.f32 %v251, %v445
        %447 = vmatprep.mubr.f32.mxu0 0.0
        %448 = vmatmul.mubr.f32.gmra.mrb[0].mxu0 %v333
        %v449 = vpop.f32.mrb[0].mxu0
        %v450 = vadd.f32 %v256, %v449
        %v451 = vpop.f32.mrb[0].mxu0
        %v452 = vadd.f32 %v256, %v451
        %453 = vmatprep.mubr.f32.mxu0 0.0
        %454 = vmatmul.mubr.f32.gmra.mrb[0].mxu0 %v336
        %v455 = vpop.f32.mrb[0].mxu0
        %v456 = vadd.f32 %v261, %v455
        %v457 = vpop.f32.mrb[0].mxu0
        %v458 = vadd.f32 %v261, %v457
        %459 = vmatprep.mubr.f32.mxu0 0.0
        %460 = vmatmul.mubr.f32.gmra.mrb[0].mxu0 %v339
        %v461 = vpop.f32.mrb[0].mxu0
        %v462 = vadd.f32 %v266, %v461
        %v463 = vpop.f32.mrb[0].mxu0
        %v464 = vadd.f32 %v266, %v463
        %465 = vmatprep.mubr.f32.mxu0 0.0
        %466 = vmatmul.mubr.f32.gmra.mrb[0].mxu0 %v342
        %v467 = vpop.f32.mrb[0].mxu0
        %v468 = vadd.f32 %v271, %v467
        %v469 = vpop.f32.mrb[0].mxu0
        %v470 = vadd.f32 %v271, %v469
        %471 = vmatprep.mubr.f32.mxu0 0.0
        %472 = vmatmul.mubr.f32.gmra.mrb[0].mxu0 %v345
        %v473 = vpop.f32.mrb[0].mxu0
        %v474 = vadd.f32 %v276, %v473
        %v475 = vpop.f32.mrb[0].mxu0
        %v476 = vadd.f32 %v276, %v475
        %477 = vmatprep.mubr.f32.mxu0 0.0
        %478 = vmatmul.mubr.f32.gmra.mrb[0].mxu0 %v348
        %v479 = vpop.f32.mrb[0].mxu0
        %v480 = vadd.f32 %v281, %v479
        %v481 = vpop.f32.mrb[0].mxu0
        %v482 = vadd.f32 %v281, %v481
        %483 = vmatprep.mubr.f32.mxu0 0.0
        %484 = vmatmul.mubr.f32.gmra.mrb[0].mxu0 %v351
        %v485 = vpop.f32.mrb[0].mxu0
        %v486 = vadd.f32 %v286, %v485
        %v487 = vpop.f32.mrb[0].mxu0
        %v488 = vadd.f32 %v286, %v487
        %489 = vmatprep.mubr.f32.mxu0 0.0
        %490 = vmatmul.mubr.f32.gmra.mrb[0].mxu0 %v354
        %v491 = vpop.f32.mrb[0].mxu0
        %v492 = vadd.f32 %v291, %v491
        %v493 = vpop.f32.mrb[0].mxu0
        %v494 = vadd.f32 %v291, %v493
        %495 = vmatprep.mubr.f32.mxu0 0.0
        %496 = vmatmul.mubr.f32.gmra.mrb[0].mxu0 %v357
        %v497 = vpop.f32.mrb[0].mxu0
        %v498 = vadd.f32 %v296, %v497
        %v499 = vpop.f32.mrb[0].mxu0
        %v500 = vadd.f32 %v296, %v499
        %501 = vmatprep.mubr.f32.mxu0 0.0
        %502 = vmatmul.mubr.f32.gmra.mrb[0].mxu0 %v360
        %v503 = vpop.f32.mrb[0].mxu0
        %v504 = vadd.f32 %v301, %v503
        %v505 = vpop.f32.mrb[0].mxu0
        %v506 = vadd.f32 %v301, %v505
        %507 = vmatprep.mubr.f32.mxu0 0.0
        %508 = vmatmul.mubr.f32.gmra.mrb[0].mxu0 %v363
        %v509 = vpop.f32.mrb[0].mxu0
        %v510 = vadd.f32 %v306, %v509
        %v511 = vpop.f32.mrb[0].mxu0
        %v512 = vadd.f32 %v306, %v511
        %513 = vmatprep.mubr.f32.mxu0 0.0
        %514 = vmatmul.mubr.f32.gmra.mrb[0].mxu0 %v366
        %v515 = vpop.f32.mrb[0].mxu0
        %v516 = vadd.f32 %v311, %v515
        %v517 = vpop.f32.mrb[0].mxu0
        %v518 = vadd.f32 %v311, %v517
        %519 = vmatprep.mubr.f32.mxu0 0.0
        %520 = vmatmul.mubr.f32.gmra.mrb[0].mxu0 %v369
        %v521 = vpop.f32.mrb[0].mxu0
        %v522 = vadd.f32 %v316, %v521
        %v523 = vpop.f32.mrb[0].mxu0
        %v524 = vadd.f32 %v316, %v523
        %525 = vmatprep.mubr.f32.mxu0 0.0
        %526 = vmatmul.mubr.f32.gmra.mrb[0].mxu0 %v372
        %v527 = vpop.f32.mrb[0].mxu0
        %v528 = vadd.f32 %v321, %v527
        %v529 = vpop.f32.mrb[0].mxu0
        %v530 = vadd.f32 %v321, %v529
        %531 = vmatprep.mubr.f32.mxu0 0.0
        %532 = vmatmul.mubr.f32.gmra.mrb[0].mxu0 %v375
        %v533 = vpop.f32.mrb[0].mxu0
        %v534 = vadd.f32 %v326, %v533
        %v535 = vpop.f32.mrb[0].mxu0
        %v536 = vadd.f32 %v326, %v535
        %537 = vdwg.mxu0
        %538 = vmatprep.subr.mxu0 %v219
        %539 = vmatpush1.msra.mxu0 %v218
        %540 = vmatprep.subr.mxu0 %v223
        %541 = vmatpush1.msra.mxu0 %v222
        %542 = vmatprep.subr.mxu0 %v227
        %543 = vmatpush1.msra.mxu0 %v226
        %544 = vmatprep.subr.mxu0 %v231
        %545 = vmatpush1.msra.mxu0 %v230
        %546 = vmatprep.subr.mxu0 0.0
        %547 = vmatpush1.msra.mxu0 0.0
        %548 = vmatprep.subr.mxu0 0.0
        %549 = vmatpush1.msra.mxu0 0.0
        %550 = vmatprep.subr.mxu0 0.0
        %551 = vmatpush1.msra.mxu0 0.0
        %552 = vmatprep.subr.mxu0 0.0
        %553 = vmatpush1.msra.mxu0 0.0
        %554 = vmatprep.subr.mxu0 0.0
        %555 = vmatpush1.msra.mxu0 0.0
        %556 = vmatprep.subr.mxu0 0.0
        %557 = vmatpush1.msra.mxu0 0.0
        %558 = vmatprep.subr.mxu0 0.0
        %559 = vmatpush1.msra.mxu0 0.0
        %560 = vmatprep.subr.mxu0 0.0
        %561 = vmatpush1.msra.mxu0 0.0
        %562 = vmatprep.subr.mxu0 0.0
        %563 = vmatpush1.msra.mxu0 0.0
        %564 = vmatprep.subr.mxu0 0.0
        %565 = vmatpush1.msra.mxu0 0.0
        %566 = vmatprep.subr.mxu0 0.0
        %567 = vmatpush1.msra.mxu0 0.0
        %568 = vmatprep.subr.mxu0 0.0
        %569 = vmatpush1.msra.mxu0 0.0
        %570 = vmatprep.subr.mxu0 0.0
        %571 = vmatpush1.msra.mxu0 0.0
        %572 = vmatprep.subr.mxu0 0.0
        %573 = vmatpush1.msra.mxu0 0.0
        %574 = vmatprep.subr.mxu0 0.0
        %575 = vmatpush1.msra.mxu0 0.0
        %576 = vmatprep.subr.mxu0 0.0
        %577 = vmatpush1.msra.mxu0 0.0
        %578 = vmatprep.subr.mxu0 0.0
        %579 = vmatpush1.msra.mxu0 0.0
        %580 = vmatprep.subr.mxu0 0.0
        %581 = vmatpush1.msra.mxu0 0.0
        %582 = vmatprep.subr.mxu0 0.0
        %583 = vmatpush1.msra.mxu0 0.0
        %584 = vmatprep.subr.mxu0 0.0
        %585 = vmatpush1.msra.mxu0 0.0
        %586 = vmatprep.subr.mxu0 0.0
        %587 = vmatpush1.msra.mxu0 0.0
        %588 = vmatprep.subr.mxu0 0.0
        %589 = vmatpush1.msra.mxu0 0.0
        %590 = vmatprep.subr.mxu0 0.0
        %591 = vmatpush1.msra.mxu0 0.0
        %592 = vmatprep.subr.mxu0 0.0
        %593 = vmatpush1.msra.mxu0 0.0
        %594 = vmatprep.subr.mxu0 0.0
        %595 = vmatpush1.msra.mxu0 0.0
        %596 = vmatprep.subr.mxu0 0.0
        %597 = vmatpush1.msra.mxu0 0.0
        %598 = vmatprep.subr.mxu0 0.0
        %599 = vmatpush1.msra.mxu0 0.0
        %600 = vmatprep.subr.mxu0 0.0
        %601 = vmatpush1.msra.mxu0 0.0
        %602 = vmatprep.mubr.f32.mxu0 0.0
        %603 = vmatmul.mubr.f32.gmra.mrb[0].mxu0 %v330
        %v604 = vpop.f32.mrb[0].mxu0
        %v605 = vadd.f32 %v251, %v604
        %v606 = vpop.f32.mrb[0].mxu0
        %v607 = vadd.f32 %v251, %v606
        %608 = vmatprep.mubr.f32.mxu0 0.0
        %609 = vmatmul.mubr.f32.gmra.mrb[0].mxu0 %v333
        %v610 = vpop.f32.mrb[0].mxu0
        %v611 = vadd.f32 %v256, %v610
        %v612 = vpop.f32.mrb[0].mxu0
        %v613 = vadd.f32 %v256, %v612
        %614 = vmatprep.mubr.f32.mxu0 0.0
        %615 = vmatmul.mubr.f32.gmra.mrb[0].mxu0 %v336
        %v616 = vpop.f32.mrb[0].mxu0
        %v617 = vadd.f32 %v261, %v616
        %v618 = vpop.f32.mrb[0].mxu0
        %v619 = vadd.f32 %v261, %v618
        %620 = vmatprep.mubr.f32.mxu0 0.0
        %621 = vmatmul.mubr.f32.gmra.mrb[0].mxu0 %v339
        %v622 = vpop.f32.mrb[0].mxu0
        %v623 = vadd.f32 %v266, %v622
        %v624 = vpop.f32.mrb[0].mxu0
        %v625 = vadd.f32 %v266, %v624
        %626 = vmatprep.mubr.f32.mxu0 0.0
        %627 = vmatmul.mubr.f32.gmra.mrb[0].mxu0 %v342
        %v628 = vpop.f32.mrb[0].mxu0
        %v629 = vadd.f32 %v271, %v628
        %v630 = vpop.f32.mrb[0].mxu0
        %v631 = vadd.f32 %v271, %v630
        %632 = vmatprep.mubr.f32.mxu0 0.0
        %633 = vmatmul.mubr.f32.gmra.mrb[0].mxu0 %v345
        %v634 = vpop.f32.mrb[0].mxu0
        %v635 = vadd.f32 %v276, %v634
        %v636 = vpop.f32.mrb[0].mxu0
        %v637 = vadd.f32 %v276, %v636
        %638 = vmatprep.mubr.f32.mxu0 0.0
        %639 = vmatmul.mubr.f32.gmra.mrb[0].mxu0 %v348
        %v640 = vpop.f32.mrb[0].mxu0
        %v641 = vadd.f32 %v281, %v640
        %v642 = vpop.f32.mrb[0].mxu0
        %v643 = vadd.f32 %v281, %v642
        %644 = vmatprep.mubr.f32.mxu0 0.0
        %645 = vmatmul.mubr.f32.gmra.mrb[0].mxu0 %v351
        %v646 = vpop.f32.mrb[0].mxu0
        %v647 = vadd.f32 %v286, %v646
        %v648 = vpop.f32.mrb[0].mxu0
        %v649 = vadd.f32 %v286, %v648
        %650 = vmatprep.mubr.f32.mxu0 0.0
        %651 = vmatmul.mubr.f32.gmra.mrb[0].mxu0 %v354
        %v652 = vpop.f32.mrb[0].mxu0
        %v653 = vadd.f32 %v291, %v652
        %v654 = vpop.f32.mrb[0].mxu0
        %v655 = vadd.f32 %v291, %v654
        %656 = vmatprep.mubr.f32.mxu0 0.0
        %657 = vmatmul.mubr.f32.gmra.mrb[0].mxu0 %v357
        %v658 = vpop.f32.mrb[0].mxu0
        %v659 = vadd.f32 %v296, %v658
        %v660 = vpop.f32.mrb[0].mxu0
        %v661 = vadd.f32 %v296, %v660
        %662 = vmatprep.mubr.f32.mxu0 0.0
        %663 = vmatmul.mubr.f32.gmra.mrb[0].mxu0 %v360
        %v664 = vpop.f32.mrb[0].mxu0
        %v665 = vadd.f32 %v301, %v664
        %v666 = vpop.f32.mrb[0].mxu0
        %v667 = vadd.f32 %v301, %v666
        %668 = vmatprep.mubr.f32.mxu0 0.0
        %669 = vmatmul.mubr.f32.gmra.mrb[0].mxu0 %v363
        %v670 = vpop.f32.mrb[0].mxu0
        %v671 = vadd.f32 %v306, %v670
        %v672 = vpop.f32.mrb[0].mxu0
        %v673 = vadd.f32 %v306, %v672
        %674 = vmatprep.mubr.f32.mxu0 0.0
        %675 = vmatmul.mubr.f32.gmra.mrb[0].mxu0 %v366
        %v676 = vpop.f32.mrb[0].mxu0
        %v677 = vadd.f32 %v311, %v676
        %v678 = vpop.f32.mrb[0].mxu0
        %v679 = vadd.f32 %v311, %v678
        %680 = vmatprep.mubr.f32.mxu0 0.0
        %681 = vmatmul.mubr.f32.gmra.mrb[0].mxu0 %v369
        %v682 = vpop.f32.mrb[0].mxu0
        %v683 = vadd.f32 %v316, %v682
        %v684 = vpop.f32.mrb[0].mxu0
        %v685 = vadd.f32 %v316, %v684
        %686 = vmatprep.mubr.f32.mxu0 0.0
        %687 = vmatmul.mubr.f32.gmra.mrb[0].mxu0 %v372
        %v688 = vpop.f32.mrb[0].mxu0
        %v689 = vadd.f32 %v321, %v688
        %v690 = vpop.f32.mrb[0].mxu0
        %v691 = vadd.f32 %v321, %v690
        %692 = vmatprep.mubr.f32.mxu0 0.0
        %693 = vmatmul.mubr.f32.gmra.mrb[0].mxu0 %v375
        %v694 = vpop.f32.mrb[0].mxu0
        %v695 = vadd.f32 %v326, %v694
        %v696 = vpop.f32.mrb[0].mxu0
        %v697 = vadd.f32 %v326, %v696
        %698 = vdwg.mxu0
        %v699 = vmax.f32 %v444, 0.0
        %v700 = vmax.f32 %v446, 0.0
        %v701 = vmax.f32 %v605, 0.0
        %v702 = vmax.f32 %v607, 0.0
        %v703 = vmax.f32 %v450, 0.0
        %v704 = vmax.f32 %v452, 0.0
        %v705 = vmax.f32 %v611, 0.0
        %v706 = vmax.f32 %v613, 0.0
        %v707 = vmax.f32 %v456, 0.0
        %v708 = vmax.f32 %v458, 0.0
        %v709 = vmax.f32 %v617, 0.0
        %v710 = vmax.f32 %v619, 0.0
        %v711 = vmax.f32 %v462, 0.0
        %v712 = vmax.f32 %v464, 0.0
        %v713 = vmax.f32 %v623, 0.0
        %v714 = vmax.f32 %v625, 0.0
        %v715 = vmax.f32 %v468, 0.0
        %v716 = vmax.f32 %v470, 0.0
        %v717 = vmax.f32 %v629, 0.0
        %v718 = vmax.f32 %v631, 0.0
        %v719 = vmax.f32 %v474, 0.0
        %v720 = vmax.f32 %v476, 0.0
        %v721 = vmax.f32 %v635, 0.0
        %v722 = vmax.f32 %v637, 0.0
        %v723 = vmax.f32 %v480, 0.0
        %v724 = vmax.f32 %v482, 0.0
        %v725 = vmax.f32 %v641, 0.0
        %v726 = vmax.f32 %v643, 0.0
        %v727 = vmax.f32 %v486, 0.0
        %v728 = vmax.f32 %v488, 0.0
        %v729 = vmax.f32 %v647, 0.0
        %v730 = vmax.f32 %v649, 0.0
        %v731 = vmax.f32 %v492, 0.0
        %v732 = vmax.f32 %v494, 0.0
        %v733 = vmax.f32 %v653, 0.0
        %v734 = vmax.f32 %v655, 0.0
        %v735 = vmax.f32 %v498, 0.0
        %v736 = vmax.f32 %v500, 0.0
        %v737 = vmax.f32 %v659, 0.0
        %v738 = vmax.f32 %v661, 0.0
        %v739 = vmax.f32 %v504, 0.0
        %v740 = vmax.f32 %v506, 0.0
        %v741 = vmax.f32 %v665, 0.0
        %v742 = vmax.f32 %v667, 0.0
        %v743 = vmax.f32 %v510, 0.0
        %v744 = vmax.f32 %v512, 0.0
        %v745 = vmax.f32 %v671, 0.0
        %v746 = vmax.f32 %v673, 0.0
        %v747 = vmax.f32 %v516, 0.0
        %v748 = vmax.f32 %v518, 0.0
        %v749 = vmax.f32 %v677, 0.0
        %v750 = vmax.f32 %v679, 0.0
        %v751 = vmax.f32 %v522, 0.0
        %v752 = vmax.f32 %v524, 0.0
        %v753 = vmax.f32 %v683, 0.0
        %v754 = vmax.f32 %v685, 0.0
        %v755 = vmax.f32 %v528, 0.0
        %v756 = vmax.f32 %v530, 0.0
        %v757 = vmax.f32 %v689, 0.0
        %v758 = vmax.f32 %v691, 0.0
        %v759 = vmax.f32 %v534, 0.0
        %v760 = vmax.f32 %v536, 0.0
        %v761 = vmax.f32 %v695, 0.0
        %v762 = vmax.f32 %v697, 0.0
        %763 = vst [vmem:[%s188] sm:$0xff] %v699
        %764 = vst [vmem:[%s188 + $0x8] sm:$0xff] %v700
        %765 = vst [vmem:[%s188 + $0x10] sm:$0xff] %v701
        %766 = vst [vmem:[%s188 + $0x18] sm:$0xff] %v702
        %767 = vst [vmem:[%s188 + $0x20] sm:$0xff] %v703
        %768 = vst [vmem:[%s188 + $0x28] sm:$0xff] %v704
        %769 = vst [vmem:[%s188 + $0x30] sm:$0xff] %v705
        %770 = vst [vmem:[%s188 + $0x38] sm:$0xff] %v706
        %771 = vst [vmem:[%s188 + $0x40] sm:$0xff] %v707
        %772 = vst [vmem:[%s188 + $0x48] sm:$0xff] %v708
        %773 = vst [vmem:[%s188 + $0x50] sm:$0xff] %v709
        %774 = vst [vmem:[%s188 + $0x58] sm:$0xff] %v710
        %775 = vst [vmem:[%s188 + $0x60] sm:$0xff] %v711
        %776 = vst [vmem:[%s188 + $0x68] sm:$0xff] %v712
        %777 = vst [vmem:[%s188 + $0x70] sm:$0xff] %v713
        %778 = vst [vmem:[%s188 + $0x78] sm:$0xff] %v714
        %779 = vst [vmem:[%s188 + $0x80] sm:$0xff] %v715
        %780 = vst [vmem:[%s188 + $0x88] sm:$0xff] %v716
        %781 = vst [vmem:[%s188 + $0x90] sm:$0xff] %v717
        %782 = vst [vmem:[%s188 + $0x98] sm:$0xff] %v718
        %783 = vst [vmem:[%s188 + $0xa0] sm:$0xff] %v719
        %784 = vst [vmem:[%s188 + $0xa8] sm:$0xff] %v720
        %785 = vst [vmem:[%s188 + $0xb0] sm:$0xff] %v721
        %786 = vst [vmem:[%s188 + $0xb8] sm:$0xff] %v722
        %787 = vst [vmem:[%s188 + $0xc0] sm:$0xff] %v723
        %788 = vst [vmem:[%s188 + $0xc8] sm:$0xff] %v724
        %789 = vst [vmem:[%s188 + $0xd0] sm:$0xff] %v725
        %790 = vst [vmem:[%s188 + $0xd8] sm:$0xff] %v726
        %791 = vst [vmem:[%s188 + $0xe0] sm:$0xff] %v727
        %792 = vst [vmem:[%s188 + $0xe8] sm:$0xff] %v728
        %793 = vst [vmem:[%s188 + $0xf0] sm:$0xff] %v729
        %794 = vst [vmem:[%s188 + $0xf8] sm:$0xff] %v730
        %795 = vst [vmem:[%s188 + $0x100] sm:$0xff] %v731
        %796 = vst [vmem:[%s188 + $0x108] sm:$0xff] %v732
        %797 = vst [vmem:[%s188 + $0x110] sm:$0xff] %v733
        %798 = vst [vmem:[%s188 + $0x118] sm:$0xff] %v734
        %799 = vst [vmem:[%s188 + $0x120] sm:$0xff] %v735
        %800 = vst [vmem:[%s188 + $0x128] sm:$0xff] %v736
        %801 = vst [vmem:[%s188 + $0x130] sm:$0xff] %v737
        %802 = vst [vmem:[%s188 + $0x138] sm:$0xff] %v738
        %803 = vst [vmem:[%s188 + $0x140] sm:$0xff] %v739
        %804 = vst [vmem:[%s188 + $0x148] sm:$0xff] %v740
        %805 = vst [vmem:[%s188 + $0x150] sm:$0xff] %v741
        %806 = vst [vmem:[%s188 + $0x158] sm:$0xff] %v742
        %807 = vst [vmem:[%s188 + $0x160] sm:$0xff] %v743
        %808 = vst [vmem:[%s188 + $0x168] sm:$0xff] %v744
        %809 = vst [vmem:[%s188 + $0x170] sm:$0xff] %v745
        %810 = vst [vmem:[%s188 + $0x178] sm:$0xff] %v746
        %811 = vst [vmem:[%s188 + $0x180] sm:$0xff] %v747
        %812 = vst [vmem:[%s188 + $0x188] sm:$0xff] %v748
        %813 = vst [vmem:[%s188 + $0x190] sm:$0xff] %v749
        %814 = vst [vmem:[%s188 + $0x198] sm:$0xff] %v750
        %815 = vst [vmem:[%s188 + $0x1a0] sm:$0xff] %v751
        %816 = vst [vmem:[%s188 + $0x1a8] sm:$0xff] %v752
        %817 = vst [vmem:[%s188 + $0x1b0] sm:$0xff] %v753
        %818 = vst [vmem:[%s188 + $0x1b8] sm:$0xff] %v754
        %819 = vst [vmem:[%s188 + $0x1c0] sm:$0xff] %v755
        %820 = vst [vmem:[%s188 + $0x1c8] sm:$0xff] %v756
        %821 = vst [vmem:[%s188 + $0x1d0] sm:$0xff] %v757
        %822 = vst [vmem:[%s188 + $0x1d8] sm:$0xff] %v758
        %823 = vst [vmem:[%s188 + $0x1e0] sm:$0xff] %v759
        %824 = vst [vmem:[%s188 + $0x1e8] sm:$0xff] %v760
        %825 = vst [vmem:[%s188 + $0x1f0] sm:$0xff] %v761
        %826 = vst [vmem:[%s188 + $0x1f8] sm:$0xff] %v762
        %s827 = sand.u32 %s109, 1
        %s828 = scalar_lea.sflag [#allocation3], %s827
        %s829 = sand.u32 %s109, 1
        %s830 = smul.addr %s829, 512
        %s831 = scalar_lea.vmem [#allocation2], %s830
        // Predicated region
        $region33: #{tpu_custom_call.1} parent=31 // pred_check
          %p832 = pneg %p119
        $region34: #{tpu_custom_call.1} parent=31 // pred_check_branch
          %834 = sbr.rel (%p832) target = $region36
        $region35: #{tpu_custom_call.1} parent=31 // pred_region
          %s835 = smul.u32 4, %s22
          %s837 = ssub.s32 8192, 8192
          %838 = vsyncadd %s828, %s837
          %s839 = smul.addr %s21, 64
          %s840 = sadd.s32 %s835, %s839
          %s841 = smul.addr %s840, 128
          %s842 = scalar_lea.hbm %s3, %s841
          %s843 = sshll.u32 %s831, 4
          %s844 = int_to_ptr.vmem [resolvable:$true] %s843
          %849 = dma.vmem_to_hbm [thread:$0]  %s844, 8192, %s842, %s828, 512, 512, 32
        $region36: #{tpu_custom_call.1} parent=31 // pred_fallthru
          _
      $region32: #{tpu_custom_call.1} parent=5 // pred_fallthru
        _
      %p850 = scmp.le.s32.totalorder 2, %s12
      // Predicated region
      $region37: #{tpu_custom_call.1} parent=5 // pred_check
        %p851 = pneg %p850
      $region38: #{tpu_custom_call.1} parent=5 // pred_check_branch
        %853 = sbr.rel (%p851) target = $region40
      $region39: #{tpu_custom_call.1} parent=5 // pred_region
        %s854 = ssub.s32 %s12, 2
        // Predicated region
        $region41: #{tpu_custom_call.1} parent=39 // pred_check
          %p855 = pneg %p125
        $region42: #{tpu_custom_call.1} parent=39 // pred_check_branch
          %857 = sbr.rel (%p855) target = $region44
        $region43: #{tpu_custom_call.1} parent=39 // pred_region
          %s858 = sand.u32 %s110, 1
          %s859 = scalar_lea.sflag [#allocation3], %s858
          %s860 = sand.u32 %s110, 1
          %s861 = smul.addr %s860, 512
          %s862 = scalar_lea.vmem [#allocation2], %s861
          %863 = dma.done %s859, 8192
        $region44: #{tpu_custom_call.1} parent=39 // pred_fallthru
          _
      $region40: #{tpu_custom_call.1} parent=5 // pred_fallthru
        _
    $region6: #{tpu_custom_call.1} parent=1 // loop_footer
      %s16 = sadd.s32 1, %s12
    $region7: #{tpu_custom_call.1} parent=1 // loop_footer_branch
      %11 = sbr.rel target = $region3
    $region8: #{tpu_custom_call.1} parent=1 // loop_exit
      _
    %864 = vsyncpa [#allocation3], 1
    %s865 = scalar_lea.sflag [#allocation3], 1
    %866 = vsyncpa %s865, 1

</llo_original>
